<compile_context>
chip_gen: v6e
topology: v6e:2x2x1
jax: 0.10.0
libtpu: 0.0.40
codegen_flags: <defaults>
</compile_context>

<pallas_src>
import functools

import jax
import jax.numpy as jnp
from jax import lax
from jax.experimental import pallas as pl
from jax.experimental.pallas import tpu as pltpu


def _conv_in_lrelu_kernel(patches_ref, w_ref, o_ref, *, imgs_per_block, spatial,
                          negative_slope, eps):
    """Conv (one MXU matmul) + InstanceNorm2d(affine=False) + LeakyReLU, all in VMEM.

    patches_ref: (F, imgs_per_block*spatial)  bf16  im2col patches, batch packed on lanes
    w_ref:       (C_out, F)                   bf16  flattened conv weight
    o_ref:       (C_out, imgs_per_block*spatial) f32
    """
    # Single lane-dense matmul for the whole block; bf16 x bf16 with f32 accumulation.
    y = jnp.dot(w_ref[...], patches_ref[...], preferred_element_type=jnp.float32)

    # Per-image InstanceNorm statistics, one fused pass (sum and sum-of-squares) per image
    # using full-width masked reduces. Everything stays at the full 128-lane width; the
    # per-image mean / rstd are merged back with lane selects (no slicing, no concat).
    inv_p = jnp.float32(1.0 / spatial)
    lane = lax.broadcasted_iota(jnp.int32, y.shape, 1)
    mean_full = jnp.zeros_like(y)
    rstd_full = jnp.zeros_like(y)
    for i in range(imgs_per_block):                       # tiny static loop (2 images)
        sel = (lane >= i * spatial) & (lane < (i + 1) * spatial)
        yi = jnp.where(sel, y, 0.0)
        s1 = jnp.sum(yi, axis=-1, keepdims=True)          # (C_out, 1)
        s2 = jnp.sum(yi * yi, axis=-1, keepdims=True)     # (C_out, 1)
        m = s1 * inv_p
        v = s2 * inv_p - m * m                            # biased variance (torch IN)
        r = lax.rsqrt(v + eps)
        mean_full = jnp.where(sel, m, mean_full)
        rstd_full = jnp.where(sel, r, rstd_full)

    z = (y - mean_full) * rstd_full
    o_ref[...] = jnp.where(z >= 0, z, negative_slope * z).astype(o_ref.dtype)


def pose_img_disc_forward(x, w, b=None, *, negative_slope=0.01, eps=1e-5):
    """x: (N, C_in, H, W); w: (C_out, C_in, K, K); b: (C_out,) (unused, see below).

    Returns the conv1-block output (N, C_out, H//2, W//2) — the value forward() computes.
    """
    # Conv bias cancels exactly under InstanceNorm2d(affine=False): skip it entirely.
    del b
    N, C_in, H, W = x.shape
    C_out, _, K, _ = w.shape
    stride = 2
    H_out, W_out = H // stride, W // stride
    P = H_out * W_out
    F = C_in * K * K

    # ---- zero-FLOP layout plumbing (wrapper side) ----
    # im2col via a single XLA op; pad=1 each side -> H/2 x W/2. Feature order is
    # (c_in, kh, kw), matching w.reshape(C_out, F). Inputs cast to bf16 once, here.
    patches = lax.conv_general_dilated_patches(
        x.astype(jnp.bfloat16), filter_shape=(K, K),
        window_strides=(stride, stride), padding=((1, 1), (1, 1)),
        dimension_numbers=("NCHW", "OIHW", "NCHW"))        # (N, F, H_out, W_out)
    # Pack batch onto the lane axis: lane index = n*P + spatial_index.
    patches = jnp.transpose(patches.reshape(N, F, P), (1, 0, 2)).reshape(F, N * P)

    w_mat = w.reshape(C_out, F).astype(jnp.bfloat16)

    # How many images share one 128-lane block (2 for the 16x16 demo -> 128 lanes).
    imgs_per_block = min(N, max(1, 128 // P))
    assert N % imgs_per_block == 0, (N, imgs_per_block)
    lanes = imgs_per_block * P
    n_blocks = N // imgs_per_block
    assert lanes % 128 == 0 or n_blocks == 1, "lane block must be 128-aligned"

    kernel = functools.partial(
        _conv_in_lrelu_kernel, imgs_per_block=imgs_per_block, spatial=P,
        negative_slope=negative_slope, eps=eps)

    out = pl.pallas_call(
        kernel,
        out_shape=jax.ShapeDtypeStruct((C_out, N * P), jnp.float32),
        grid=(n_blocks,),                                   # parallel over batch blocks
        in_specs=[
            pl.BlockSpec((F, lanes), lambda blk: (0, blk)),     # im2col patches block
            pl.BlockSpec((C_out, F), lambda blk: (0, 0)),       # conv weight (replicated)
        ],
        out_specs=pl.BlockSpec((C_out, lanes), lambda blk: (0, blk)),
        compiler_params=pltpu.CompilerParams(
            dimension_semantics=("parallel",)),
    )(patches, w_mat)

    # (C_out, N, H_out, W_out) -> (N, C_out, H_out, W_out): wrapper-side layout plumbing.
    return jnp.transpose(out.reshape(C_out, N, H_out, W_out), (1, 0, 2, 3))


def pose_img_disc_reference(x, w, b, *, negative_slope=0.01, eps=1e-5):
    """Pure-JAX reference: Conv2d(k4,s2,p1) + bias + InstanceNorm2d + LeakyReLU.

    Conv inputs are rounded to bf16 (same as the kernel) with f32 accumulation, so the
    comparison is accumulation-order-only. Bias is kept here; it cancels under IN.
    """
    y = lax.conv_general_dilated(
        x.astype(jnp.bfloat16), w.astype(jnp.bfloat16),
        window_strides=(2, 2), padding=((1, 1), (1, 1)),
        dimension_numbers=("NCHW", "OIHW", "NCHW"),
        preferred_element_type=jnp.float32)
    y = y + b[None, :, None, None]
    mean = y.mean(axis=(2, 3), keepdims=True)
    var = jnp.square(y - mean).mean(axis=(2, 3), keepdims=True)
    y = (y - mean) * lax.rsqrt(var + eps)
    return jnp.where(y >= 0, y, negative_slope * y)


if __name__ == "__main__":
    # Small shapes consistent with the module's forward: NCHW image input.
    N, C_in, H, W = 2, 4, 16, 16
    C_out, K = 8, 4

    key = jax.random.PRNGKey(0)
    kx, kw, kb = jax.random.split(key, 3)

    x = jax.random.normal(kx, (N, C_in, H, W), dtype=jnp.float32)

    fan_in = C_in * K * K
    bound = 1.0 / jnp.sqrt(jnp.float32(fan_in))
    w = jax.random.uniform(kw, (C_out, C_in, K, K), jnp.float32, -bound, bound)
    b = jax.random.uniform(kb, (C_out,), jnp.float32, -bound, bound)

    # conv2 / conv3 are defined by the module but never used in forward(); not needed here.

    out = pose_img_disc_forward(x, w, b)
    jax.block_until_ready(out)

    ref = pose_img_disc_reference(x, w, b)
    assert out.shape == (N, C_out, H // 2, W // 2), out.shape
    assert jnp.allclose(out, ref, atol=1e-3, rtol=1e-3), float(jnp.max(jnp.abs(out - ref)))

    print("KERNEL_OK")
</pallas_src>

<mosaic_0001>
module attributes {stable_mosaic.version = 11 : i64} {
  func.func @_conv_in_lrelu_kernel(%arg0: i32, %arg1: memref<64x128xbf16, #tpu.memory_space<vmem>>, %arg2: memref<8x64xbf16, #tpu.memory_space<vmem>>, %arg3: memref<8x128xf32, #tpu.memory_space<vmem>>) attributes {dimension_semantics = [#tpu.dimension_semantics<parallel>], iteration_bounds = array<i64: 1>, scalar_prefetch = 0 : i64, scratch_operands = 0 : i64, tpu.core_type = #tpu.core_type<tc>, window_params = [{transform_indices = @transform_0, window_bounds = array<i64: 64, 128>}, {pipeline_mode = #tpu.pipeline_mode<synchronous>, transform_indices = @transform_1, window_bounds = array<i64: 8, 64>}, {transform_indices = @transform_2, window_bounds = array<i64: 8, 128>}]} {
    %c0 = arith.constant 0 : index
    %c0_0 = arith.constant 0 : index
    %0 = vector.load %arg2[%c0, %c0_0] : memref<8x64xbf16, #tpu.memory_space<vmem>>, vector<8x64xbf16>
    %c0_1 = arith.constant 0 : index
    %c0_2 = arith.constant 0 : index
    %1 = vector.load %arg1[%c0_1, %c0_2] : memref<64x128xbf16, #tpu.memory_space<vmem>>, vector<64x128xbf16>
    %cst = arith.constant dense<0.000000e+00> : vector<8x128xf32>
    %2 = tpu.matmul %0, %1, %cst {dimension_numbers = #tpu.dot_dimension_numbers<[1], [0], [0], [1], [0, 0, 1, 1], [], []>} : vector<8x64xbf16>, vector<64x128xbf16>, vector<8x128xf32> -> vector<8x128xf32>
    %3 = tpu.iota {dimensions = array<i32: 1>} : vector<8x128xi32>
    %cst_3 = arith.constant 0.000000e+00 : f32
    %4 = vector.broadcast %cst_3 : f32 to vector<8x128xf32>
    %cst_4 = arith.constant 0.000000e+00 : f32
    %5 = vector.broadcast %cst_4 : f32 to vector<8x128xf32>
    %c0_i32 = arith.constant 0 : i32
    %6 = vector.broadcast %c0_i32 : i32 to vector<8x128xi32>
    %7 = arith.cmpi sge, %3, %6 : vector<8x128xi32>
    %c64_i32 = arith.constant 64 : i32
    %8 = vector.broadcast %c64_i32 : i32 to vector<8x128xi32>
    %9 = arith.cmpi slt, %3, %8 : vector<8x128xi32>
    %10 = arith.andi %7, %9 : vector<8x128xi1>
    %cst_5 = arith.constant 0.000000e+00 : f32
    %11 = vector.broadcast %cst_5 : f32 to vector<8x128xf32>
    %12 = arith.select %10, %2, %11 : vector<8x128xi1>, vector<8x128xf32>
    %cst_6 = arith.constant dense<0.000000e+00> : vector<8xf32>
    %13 = vector.multi_reduction <add>, %12, %cst_6 [1] : vector<8x128xf32> to vector<8xf32>
    %14 = vector.shape_cast %13 : vector<8xf32> to vector<8x1xf32>
    %15 = arith.mulf %12, %12 : vector<8x128xf32>
    %cst_7 = arith.constant dense<0.000000e+00> : vector<8xf32>
    %16 = vector.multi_reduction <add>, %15, %cst_7 [1] : vector<8x128xf32> to vector<8xf32>
    %17 = vector.shape_cast %16 : vector<8xf32> to vector<8x1xf32>
    %cst_8 = arith.constant 1.562500e-02 : f32
    %18 = vector.broadcast %cst_8 : f32 to vector<8x1xf32>
    %19 = arith.mulf %14, %18 : vector<8x1xf32>
    %cst_9 = arith.constant 1.562500e-02 : f32
    %20 = vector.broadcast %cst_9 : f32 to vector<8x1xf32>
    %21 = arith.mulf %17, %20 : vector<8x1xf32>
    %22 = arith.mulf %19, %19 : vector<8x1xf32>
    %23 = arith.subf %21, %22 : vector<8x1xf32>
    %cst_10 = arith.constant 9.99999974E-6 : f32
    %24 = vector.broadcast %cst_10 : f32 to vector<8x1xf32>
    %25 = arith.addf %23, %24 : vector<8x1xf32>
    %26 = math.rsqrt %25 : vector<8x1xf32>
    %27 = vector.shape_cast %19 : vector<8x1xf32> to vector<8x1xf32>
    %28 = vector.broadcast %27 : vector<8x1xf32> to vector<8x128xf32>
    %29 = arith.select %10, %28, %4 : vector<8x128xi1>, vector<8x128xf32>
    %30 = vector.shape_cast %26 : vector<8x1xf32> to vector<8x1xf32>
    %31 = vector.broadcast %30 : vector<8x1xf32> to vector<8x128xf32>
    %32 = arith.select %10, %31, %5 : vector<8x128xi1>, vector<8x128xf32>
    %c64_i32_11 = arith.constant 64 : i32
    %33 = vector.broadcast %c64_i32_11 : i32 to vector<8x128xi32>
    %34 = arith.cmpi sge, %3, %33 : vector<8x128xi32>
    %c128_i32 = arith.constant 128 : i32
    %35 = vector.broadcast %c128_i32 : i32 to vector<8x128xi32>
    %36 = arith.cmpi slt, %3, %35 : vector<8x128xi32>
    %37 = arith.andi %34, %36 : vector<8x128xi1>
    %cst_12 = arith.constant 0.000000e+00 : f32
    %38 = vector.broadcast %cst_12 : f32 to vector<8x128xf32>
    %39 = arith.select %37, %2, %38 : vector<8x128xi1>, vector<8x128xf32>
    %cst_13 = arith.constant dense<0.000000e+00> : vector<8xf32>
    %40 = vector.multi_reduction <add>, %39, %cst_13 [1] : vector<8x128xf32> to vector<8xf32>
    %41 = vector.shape_cast %40 : vector<8xf32> to vector<8x1xf32>
    %42 = arith.mulf %39, %39 : vector<8x128xf32>
    %cst_14 = arith.constant dense<0.000000e+00> : vector<8xf32>
    %43 = vector.multi_reduction <add>, %42, %cst_14 [1] : vector<8x128xf32> to vector<8xf32>
    %44 = vector.shape_cast %43 : vector<8xf32> to vector<8x1xf32>
    %cst_15 = arith.constant 1.562500e-02 : f32
    %45 = vector.broadcast %cst_15 : f32 to vector<8x1xf32>
    %46 = arith.mulf %41, %45 : vector<8x1xf32>
    %cst_16 = arith.constant 1.562500e-02 : f32
    %47 = vector.broadcast %cst_16 : f32 to vector<8x1xf32>
    %48 = arith.mulf %44, %47 : vector<8x1xf32>
    %49 = arith.mulf %46, %46 : vector<8x1xf32>
    %50 = arith.subf %48, %49 : vector<8x1xf32>
    %cst_17 = arith.constant 9.99999974E-6 : f32
    %51 = vector.broadcast %cst_17 : f32 to vector<8x1xf32>
    %52 = arith.addf %50, %51 : vector<8x1xf32>
    %53 = math.rsqrt %52 : vector<8x1xf32>
    %54 = vector.shape_cast %46 : vector<8x1xf32> to vector<8x1xf32>
    %55 = vector.broadcast %54 : vector<8x1xf32> to vector<8x128xf32>
    %56 = arith.select %37, %55, %29 : vector<8x128xi1>, vector<8x128xf32>
    %57 = vector.shape_cast %53 : vector<8x1xf32> to vector<8x1xf32>
    %58 = vector.broadcast %57 : vector<8x1xf32> to vector<8x128xf32>
    %59 = arith.select %37, %58, %32 : vector<8x128xi1>, vector<8x128xf32>
    %60 = arith.subf %2, %56 : vector<8x128xf32>
    %61 = arith.mulf %60, %59 : vector<8x128xf32>
    %cst_18 = arith.constant 0.000000e+00 : f32
    %62 = vector.broadcast %cst_18 : f32 to vector<8x128xf32>
    %63 = arith.cmpf oge, %61, %62 : vector<8x128xf32>
    %cst_19 = arith.constant 0.00999999977 : f32
    %64 = vector.broadcast %cst_19 : f32 to vector<8x128xf32>
    %65 = arith.mulf %64, %61 : vector<8x128xf32>
    %66 = arith.select %63, %61, %65 : vector<8x128xi1>, vector<8x128xf32>
    %c0_20 = arith.constant 0 : index
    %c0_21 = arith.constant 0 : index
    %67 = vector.load %arg3[%c0_20, %c0_21] : memref<8x128xf32, #tpu.memory_space<vmem>>, vector<8x128xf32>
    tpu.vector_store %arg3[%c0_20, %c0_21], %66 {strides = array<i32>} : memref<8x128xf32, #tpu.memory_space<vmem>>, vector<8x128xf32>,
    return
  }
  func.func @transform_0(%arg0: i32) -> (i32, i32) {
    %c0_i32 = arith.constant 0 : i32
    %c0_i32_0 = arith.constant 0 : i32
    return %c0_i32, %arg0 : i32, i32
  }
  func.func @transform_1(%arg0: i32) -> (i32, i32) {
    %c0_i32 = arith.constant 0 : i32
    %c0_i32_0 = arith.constant 0 : i32
    %c0_i32_1 = arith.constant 0 : i32
    return %c0_i32, %c0_i32_0 : i32, i32
  }
  func.func @transform_2(%arg0: i32) -> (i32, i32) {
    %c0_i32 = arith.constant 0 : i32
    %c0_i32_0 = arith.constant 0 : i32
    return %c0_i32, %arg0 : i32, i32
  }
}

</mosaic_0001>

<llo_original>
// kernel: tpu_custom_call.1
$region0: #{tpu_custom_call.1}
  #allocation0 [shape = 'u32[]', space=smem, size = 0x4, offset = 0x4, fixed_abs, tag = 'smem constant byte address 0x4 - core index']
  #allocation1 [shape = 'u32[144,128]{1,0:T(1,128)}', space=vmem, size = 0x12000, scoped, tag = 'internal scratch']
  %s0 = inlined_call_operand.hbm [shape: bf16[64,128], index: 0, kind: input, shape index: {}]
  %s1 = inlined_call_operand.hbm [shape: bf16[8,64], index: 1, kind: input, shape index: {}]
  %s2 = inlined_call_operand.hbm [shape: f32[8,128], index: 2, kind: output, shape index: {}]
  %s3 = sld [smem:[#allocation0]]
  $region26: #{tpu_custom_call.1} parent=0
    _
  %s5 = ssub.s32 1, %s3
  %s6 = scalar_select 0, %s5, %s3
  $region1: #{tpu_custom_call.1} parent=0
    #allocation2 [shape = 'u8[16384]{0}', space=vmem, size = 0x4000, scoped, tag = 'input window, operand 0, single buffered']
    #allocation3 [shape = 's32[1]{0}', space=sflag, size = 0x4, scoped, tag = 'scoped memory for tpu_custom_call.1']
    #allocation4 [shape = 's32[1]{0}', space=sflag, size = 0x4, scoped, tag = 'scoped memory for tpu_custom_call.1']
    #allocation5 [shape = 'u8[2048]{0}', space=vmem, size = 0x800, scoped, tag = 'input window, operand 1, single buffered']
    #allocation6 [shape = 's32[1]{0}', space=sflag, size = 0x4, scoped, tag = 'scoped memory for tpu_custom_call.1']
    #allocation7 [shape = 'u8[4096]{0}', space=vmem, size = 0x1000, scoped, tag = 'output window, operand 0, single buffered']
    %7 = vsyncpa [#allocation3], 0
    %8 = vsyncpa [#allocation6], 0
    %9 = vsyncpa [#allocation4], 0
    // Predicated region
    $region2: #{tpu_custom_call.1} parent=1 // pred_check
      _
    $region3: #{tpu_custom_call.1} parent=1 // pred_check_branch
      %11 = sbr.rel (0) target = $region5
    $region4: #{tpu_custom_call.1} parent=1 // pred_region
      %s13 = ssub.s32 512, 512
      %14 = vsyncadd [#allocation3], %s13
      %s15 = sshll.u32 [#allocation2], 4
      %s16 = int_to_ptr.vmem [resolvable:$true] %s15
      %21 = dma.hbm_to_vmem [thread:$0]  %s0, 512, %s16, [#allocation3], 64, 64, 4
    $region5: #{tpu_custom_call.1} parent=1 // pred_fallthru
      _
    // Predicated region
    $region6: #{tpu_custom_call.1} parent=1 // pred_check
      _
    $region7: #{tpu_custom_call.1} parent=1 // pred_check_branch
      %23 = sbr.rel (0) target = $region9
    $region8: #{tpu_custom_call.1} parent=1 // pred_region
      %s25 = ssub.s32 64, 64
      %26 = vsyncadd [#allocation6], %s25
      %s28 = sshll.u32 [#allocation5], 4
      %s29 = int_to_ptr.vmem [resolvable:$true] %s28
      %31 = dma.hbm_to_vmem [thread:$0]  %s1, 64, %s29, [#allocation6]
    $region9: #{tpu_custom_call.1} parent=1 // pred_fallthru
      _
    // Predicated region
    $region10: #{tpu_custom_call.1} parent=1 // pred_check
      _
    $region11: #{tpu_custom_call.1} parent=1 // pred_check_branch
      %33 = sbr.rel (0) target = $region13
    $region12: #{tpu_custom_call.1} parent=1 // pred_region
      %34 = dma.done [#allocation3], 512
    $region13: #{tpu_custom_call.1} parent=1 // pred_fallthru
      _
    // Predicated region
    $region14: #{tpu_custom_call.1} parent=1 // pred_check
      _
    $region15: #{tpu_custom_call.1} parent=1 // pred_check_branch
      %36 = sbr.rel (0) target = $region17
    $region16: #{tpu_custom_call.1} parent=1 // pred_region
      %37 = dma.done [#allocation6], 64
    $region17: #{tpu_custom_call.1} parent=1 // pred_fallthru
      _
    %v39 = vld [vmem:[#allocation5] sm:$0xf]
    %v40 = vld [vmem:[#allocation2] sm:$0xf]
    %v41 = vld [vmem:[#allocation2 + $0x4] sm:$0xf]
    %v42 = vld [vmem:[#allocation2 + $0x8] sm:$0xf]
    %v43 = vld [vmem:[#allocation2 + $0xc] sm:$0xf]
    %v44 = vld [vmem:[#allocation2 + $0x10] sm:$0xf]
    %v45 = vld [vmem:[#allocation2 + $0x14] sm:$0xf]
    %v46 = vld [vmem:[#allocation2 + $0x18] sm:$0xf]
    %v47 = vld [vmem:[#allocation2 + $0x1c] sm:$0xf]
    %v56 = vunpack.c.l.b16 %v40
    %v57 = vunpack.c.l.b16 %v41
    %v58 = vunpack.c.l.b16 %v42
    %v59 = vunpack.c.l.b16 %v43
    %v60 = vunpack.c.l.b16 %v44
    %v61 = vunpack.c.l.b16 %v45
    %v62 = vunpack.c.l.b16 %v46
    %v63 = vunpack.c.l.b16 %v47
    %v64 = vpack.c.b16 %v57, %v56
    %v65 = vpack.c.b16 %v59, %v58
    %v66 = vpack.c.b16 %v61, %v60
    %v67 = vpack.c.b16 %v63, %v62
    %vm72 = vcmask 523264
    %v74 = vsel %vm72, %v39, 0
    %76 = vmatprep.subr.bf16.mxu0 0
    %77 = vmatpush1.bf16.msra.mxu0 0
    %78 = vmatprep.subr.bf16.mxu0 0
    %79 = vmatpush1.bf16.msra.mxu0 0
    %80 = vmatprep.subr.bf16.mxu0 0
    %81 = vmatpush1.bf16.msra.mxu0 0
    %82 = vmatprep.subr.bf16.mxu0 0
    %83 = vmatpush1.bf16.msra.mxu0 0
    %84 = vmatprep.subr.bf16.mxu0 0
    %85 = vmatpush1.bf16.msra.mxu0 %v67
    %86 = vmatprep.subr.bf16.mxu0 0
    %87 = vmatpush1.bf16.msra.mxu0 %v66
    %88 = vmatprep.subr.bf16.mxu0 0
    %89 = vmatpush1.bf16.msra.mxu0 %v65
    %90 = vmatprep.subr.bf16.mxu0 0
    %91 = vmatpush1.bf16.msra.mxu0 %v64
    %92 = vmatprep.subr.bf16.mxu0 0
    %93 = vmatpush2.bf16.msra.mxu0 0
    %94 = vmatprep.subr.bf16.mxu0 0
    %95 = vmatpush2.bf16.msra.mxu0 0
    %96 = vmatprep.subr.bf16.mxu0 0
    %97 = vmatpush2.bf16.msra.mxu0 0
    %98 = vmatprep.subr.bf16.mxu0 0
    %99 = vmatpush2.bf16.msra.mxu0 0
    %100 = vmatprep.subr.bf16.mxu0 0
    %101 = vmatpush2.bf16.msra.mxu0 0
    %102 = vmatprep.subr.bf16.mxu0 0
    %103 = vmatpush2.bf16.msra.mxu0 0
    %104 = vmatprep.subr.bf16.mxu0 0
    %105 = vmatpush2.bf16.msra.mxu0 0
    %106 = vmatprep.subr.bf16.mxu0 0
    %107 = vmatpush2.bf16.msra.mxu0 0
    %108 = vmatprep.mubr.bf16.mxu0 0
    %109 = vmatmul.mubr.bf16.gmra.mxu0 %v74
    %v110 = vpop.f32.mrf.mxu0
    %v111 = vadd.f32 0.0, %v110
    %v112 = vpop.f32.mrf.mxu0
    %v113 = vpop.f32.mrf.mxu0
    %v114 = vpop.f32.mrf.mxu0
    %115 = vdwg.mxu0
    %v116 = vlaneseq
    %v117 = vand.u32 %v116, 127
    %vm118 = vcmp.ge.s32.totalorder %v117, 0
    %vm119 = vcmp.lt.s32.totalorder %v117, 64
    %vm120 = vmand %vm118, %vm119
    %v121 = vsel %vm120, %v111, 0.0
    %122 = vadd.xlane.f32.xlu0 %v121
    %v123 = vpop.xlane.xlu0 %122
    %v124 = vmul.f32 %v121, %v121
    %125 = vadd.xlane.f32.xlu0 %v124
    %v126 = vpop.xlane.xlu0 %125
    %v127 = vmul.f32 %v123, 0.015625
    %v128 = vmul.f32 %v126, 0.015625
    %v129 = vmul.f32 %v127, %v127
    %v130 = vsub.f32 %v128, %v129
    %v131 = vadd.f32 %v130, 1e-05
    %v132 = vrsqrt.pop %v131
    %v133 = vsel %vm120, %v127, 0.0
    %v134 = vsel %vm120, %v132, 0.0
    %vm135 = vcmp.ge.s32.totalorder %v117, 64
    %vm136 = vcmp.lt.s32.totalorder %v117, 128
    %vm137 = vmand %vm135, %vm136
    %v138 = vsel %vm137, %v111, 0.0
    %139 = vadd.xlane.f32.xlu0 %v138
    %v140 = vpop.xlane.xlu0 %139
    %v141 = vmul.f32 %v138, %v138
    %142 = vadd.xlane.f32.xlu0 %v141
    %v143 = vpop.xlane.xlu0 %142
    %v144 = vmul.f32 %v140, 0.015625
    %v145 = vmul.f32 %v143, 0.015625
    %v146 = vmul.f32 %v144, %v144
    %v147 = vsub.f32 %v145, %v146
    %v148 = vadd.f32 %v147, 1e-05
    %v149 = vrsqrt.pop %v148
    %v150 = vsel %vm137, %v144, %v133
    %v151 = vsel %vm137, %v149, %v134
    %v152 = vsub.f32 %v111, %v150
    %v153 = vmul.f32 %v152, %v151
    %vm154 = vcmp.ge.f32.partialorder %v153, 0.0
    %v155 = vmul.f32 %v153, 0.01
    %v156 = vsel %vm154, %v153, %v155
    %157 = vst [vmem:[#allocation7] sm:$0xff] %v156
    // Predicated region
    $region18: #{tpu_custom_call.1} parent=1 // pred_check
      _
    $region19: #{tpu_custom_call.1} parent=1 // pred_check_branch
      %159 = sbr.rel (0) target = $region21
    $region20: #{tpu_custom_call.1} parent=1 // pred_region
      %s161 = ssub.s32 128, 128
      %162 = vsyncadd [#allocation4], %s161
      %s164 = sshll.u32 [#allocation7], 4
      %s165 = int_to_ptr.vmem [resolvable:$true] %s164
      %167 = dma.vmem_to_hbm [thread:$0]  %s165, 128, %s2, [#allocation4]
    $region21: #{tpu_custom_call.1} parent=1 // pred_fallthru
      _
    // Predicated region
    $region22: #{tpu_custom_call.1} parent=1 // pred_check
      _
    $region23: #{tpu_custom_call.1} parent=1 // pred_check_branch
      %169 = sbr.rel (0) target = $region25
    $region24: #{tpu_custom_call.1} parent=1 // pred_region
      %170 = dma.done [#allocation4], 128
    $region25: #{tpu_custom_call.1} parent=1 // pred_fallthru
      _
    %171 = vsyncpa [#allocation3], 1
    %172 = vsyncpa [#allocation6], 1
    %173 = vsyncpa [#allocation4], 1

</llo_original>
